<compile_context>
chip_gen: v5e
topology: v5e:2x2
jax: 0.10.0
libtpu: 0.0.40
codegen_flags: <defaults>
</compile_context>

<pallas_src>
import math
import jax
import jax.numpy as jnp
from jax.experimental import pallas as pl
from jax.experimental.pallas import tpu as pltpu


def critic_kernel(x_ref, w1_ref, b1_ref, w2s_ref, b2_ref, o_ref):
    """One batch element per grid step.

    x_ref  : (N, D)   state embeddings for this batch element
    w1_ref : (D, D)   first Linear weight, layout (in, out), resident
    b1_ref : (1, D)   first Linear bias, resident
    w2s_ref: (1, D)   second Linear weight row, pre-scaled by 1/N, resident
    b2_ref : (1,)     second Linear bias (scalar, SMEM)
    o_ref  : (1, 128) lane-dense output block; value broadcast across lanes
    """
    # Linear 1 (single 2-D MXU matmul, f32 accumulation) + bias + ReLU
    h = jnp.dot(x_ref[...], w1_ref[...], preferred_element_type=jnp.float32)  # (N, D)
    h = jnp.maximum(h + b1_ref[...], 0.0)

    # Fused [Linear2 (D->1)  +  mean over N]:
    #   sum over nodes first (sublane reduce), then one full-lane reduce
    #   against w2/N, then add b2.
    hbar = jnp.sum(h, axis=0, keepdims=True)                                  # (1, D)
    val = jnp.sum(hbar * w2s_ref[...], axis=-1, keepdims=True) + b2_ref[0]    # (1, 1)

    o_ref[...] = jnp.broadcast_to(val, o_ref.shape)


def critic_forward(x, w1, b1, w2, b2):
    """x: (B, N, D); w1: (D, D) as (in, out); b1: (1, D); w2: (1, D); b2: (1,)."""
    B, N, D = x.shape
    # Fold the 1/N of the node-mean into the D->1 projection weights.
    w2_scaled = w2 * (1.0 / float(N))

    out_padded = pl.pallas_call(
        critic_kernel,
        out_shape=jax.ShapeDtypeStruct((B, 1, 128), jnp.float32),
        grid=(B,),
        in_specs=[
            pl.BlockSpec((None, N, D), lambda b: (b, 0, 0)),        # x: one batch / step
            pl.BlockSpec((D, D), lambda b: (0, 0)),                 # w1: resident
            pl.BlockSpec((1, D), lambda b: (0, 0)),                 # b1: resident
            pl.BlockSpec((1, D), lambda b: (0, 0)),                 # w2/N: resident
            pl.BlockSpec(memory_space=pltpu.MemorySpace.SMEM),      # b2: scalar in SMEM
        ],
        out_specs=pl.BlockSpec((None, 1, 128), lambda b: (b, 0, 0)),
        compiler_params=pltpu.CompilerParams(
            dimension_semantics=("parallel",),
        ),
    )(x, w1, b1, w2_scaled, b2)

    # Lane-dense padded output -> (B, 1)
    return out_padded[:, 0, :1]


def init_params(key, embedding_dim):
    """Deterministic init mirroring torch.nn.Linear default (uniform +-1/sqrt(fan_in))."""
    D = embedding_dim
    k1, k2, k3, k4 = jax.random.split(key, 4)
    bound = 1.0 / math.sqrt(D)
    w1 = jax.random.uniform(k1, (D, D), jnp.float32, -bound, bound)   # (in, out)
    b1 = jax.random.uniform(k2, (1, D), jnp.float32, -bound, bound)
    w2 = jax.random.uniform(k3, (1, D), jnp.float32, -bound, bound)   # row of the (D, 1) weight
    b2 = jax.random.uniform(k4, (1,), jnp.float32, -bound, bound)
    return w1, b1, w2, b2


def critic_reference(x, w1, b1, w2, b2):
    """Pure-JAX reference for validation (matches the PyTorch module)."""
    h = jnp.maximum(jnp.einsum("bnd,de->bne", x, w1) + b1[None], 0.0)
    fusion = jnp.sum(h * w2[0][None, None, :], axis=-1) + b2[0]       # (B, N)
    return jnp.mean(fusion, axis=-1, keepdims=True)                   # (B, 1)


if __name__ == "__main__":
    B, N, D = 2, 8, 128  # batch, num p_net nodes, embedding_dim (module default 128)

    key = jax.random.PRNGKey(0)
    kx, kp = jax.random.split(key)
    x = jax.random.normal(kx, (B, N, D), dtype=jnp.float32)
    w1, b1, w2, b2 = init_params(kp, D)

    out = jax.block_until_ready(critic_forward(x, w1, b1, w2, b2))
    ref = critic_reference(x, w1, b1, w2, b2)

    assert out.shape == (B, 1), out.shape
    assert jnp.allclose(out, ref, atol=1e-4, rtol=1e-4), (out, ref)

    print("KERNEL_OK")
</pallas_src>

<mosaic_0001>
module attributes {stable_mosaic.version = 11 : i64} {
  func.func @critic_kernel(%arg0: i32, %arg1: memref<1x8x128xf32, #tpu.memory_space<vmem>>, %arg2: memref<128x128xf32, #tpu.memory_space<vmem>>, %arg3: memref<1x128xf32, #tpu.memory_space<vmem>>, %arg4: memref<1x128xf32, #tpu.memory_space<vmem>>, %arg5: memref<1xf32, #tpu.memory_space<smem>>, %arg6: memref<1x1x128xf32, #tpu.memory_space<vmem>>) attributes {dimension_semantics = [#tpu.dimension_semantics<parallel>], iteration_bounds = array<i64: 2>, scalar_prefetch = 0 : i64, scratch_operands = 0 : i64, tpu.core_type = #tpu.core_type<tc>, window_params = [{transform_indices = @transform_0, window_bounds = array<i64: 1, 8, 128>}, {pipeline_mode = #tpu.pipeline_mode<synchronous>, transform_indices = @transform_1, window_bounds = array<i64: 128, 128>}, {pipeline_mode = #tpu.pipeline_mode<synchronous>, transform_indices = @transform_2, window_bounds = array<i64: 1, 128>}, {pipeline_mode = #tpu.pipeline_mode<synchronous>, transform_indices = @transform_3, window_bounds = array<i64: 1, 128>}, {transform_indices = @transform_4, window_bounds = array<i64: 1>}, {transform_indices = @transform_5, window_bounds = array<i64: 1, 1, 128>}]} {
    %c0 = arith.constant 0 : index
    %c0_0 = arith.constant 0 : index
    %c0_1 = arith.constant 0 : index
    %0 = vector.load %arg1[%c0, %c0_0, %c0_1] : memref<1x8x128xf32, #tpu.memory_space<vmem>>, vector<1x8x128xf32>
    %1 = vector.shape_cast %0 : vector<1x8x128xf32> to vector<8x128xf32>
    %c0_2 = arith.constant 0 : index
    %c0_3 = arith.constant 0 : index
    %2 = vector.load %arg2[%c0_2, %c0_3] : memref<128x128xf32, #tpu.memory_space<vmem>>, vector<128x128xf32>
    %cst = arith.constant dense<0.000000e+00> : vector<8x128xf32>
    %3 = tpu.matmul %1, %2, %cst {dimension_numbers = #tpu.dot_dimension_numbers<[1], [0], [0], [1], [0, 0, 1, 1], [], []>} : vector<8x128xf32>, vector<128x128xf32>, vector<8x128xf32> -> vector<8x128xf32>
    %c0_4 = arith.constant 0 : index
    %c0_5 = arith.constant 0 : index
    %4 = vector.load %arg3[%c0_4, %c0_5] : memref<1x128xf32, #tpu.memory_space<vmem>>, vector<1x128xf32>
    %5 = vector.broadcast %4 : vector<1x128xf32> to vector<8x128xf32>
    %6 = arith.addf %3, %5 : vector<8x128xf32>
    %cst_6 = arith.constant 0.000000e+00 : f32
    %7 = vector.broadcast %cst_6 : f32 to vector<8x128xf32>
    %8 = arith.maximumf %6, %7 : vector<8x128xf32>
    %cst_7 = arith.constant dense<0.000000e+00> : vector<128xf32>
    %9 = vector.multi_reduction <add>, %8, %cst_7 [0] : vector<8x128xf32> to vector<128xf32>
    %10 = vector.shape_cast %9 : vector<128xf32> to vector<1x128xf32>
    %c0_8 = arith.constant 0 : index
    %c0_9 = arith.constant 0 : index
    %11 = vector.load %arg4[%c0_8, %c0_9] : memref<1x128xf32, #tpu.memory_space<vmem>>, vector<1x128xf32>
    %12 = arith.mulf %10, %11 : vector<1x128xf32>
    %cst_10 = arith.constant dense<0.000000e+00> : vector<1xf32>
    %13 = vector.multi_reduction <add>, %12, %cst_10 [1] : vector<1x128xf32> to vector<1xf32>
    %14 = vector.shape_cast %13 : vector<1xf32> to vector<1x1xf32>
    %c0_11 = arith.constant 0 : index
    %15 = memref.load %arg5[%c0_11] : memref<1xf32, #tpu.memory_space<smem>>
    %16 = vector.broadcast %15 : f32 to vector<1x1xf32>
    %17 = arith.addf %14, %16 : vector<1x1xf32>
    %18 = vector.shape_cast %17 : vector<1x1xf32> to vector<1x1xf32>
    %19 = vector.broadcast %18 : vector<1x1xf32> to vector<1x128xf32>
    %c0_12 = arith.constant 0 : index
    %c0_13 = arith.constant 0 : index
    %c0_14 = arith.constant 0 : index
    %20 = vector.load %arg6[%c0_12, %c0_13, %c0_14] : memref<1x1x128xf32, #tpu.memory_space<vmem>>, vector<1x1x128xf32>
    %21 = vector.shape_cast %20 : vector<1x1x128xf32> to vector<1x128xf32>
    %22 = vector.shape_cast %19 : vector<1x128xf32> to vector<1x1x128xf32>
    tpu.vector_store %arg6[%c0_12, %c0_13, %c0_14], %22 {strides = array<i32>} : memref<1x1x128xf32, #tpu.memory_space<vmem>>, vector<1x1x128xf32>,
    return
  }
  func.func @transform_0(%arg0: i32) -> (i32, i32, i32) {
    %c0_i32 = arith.constant 0 : i32
    %c0_i32_0 = arith.constant 0 : i32
    %c0_i32_1 = arith.constant 0 : i32
    return %arg0, %c0_i32, %c0_i32_0 : i32, i32, i32
  }
  func.func @transform_1(%arg0: i32) -> (i32, i32) {
    %c0_i32 = arith.constant 0 : i32
    %c0_i32_0 = arith.constant 0 : i32
    %c0_i32_1 = arith.constant 0 : i32
    return %c0_i32, %c0_i32_0 : i32, i32
  }
  func.func @transform_2(%arg0: i32) -> (i32, i32) {
    %c0_i32 = arith.constant 0 : i32
    %c0_i32_0 = arith.constant 0 : i32
    %c0_i32_1 = arith.constant 0 : i32
    return %c0_i32, %c0_i32_0 : i32, i32
  }
  func.func @transform_3(%arg0: i32) -> (i32, i32) {
    %c0_i32 = arith.constant 0 : i32
    %c0_i32_0 = arith.constant 0 : i32
    %c0_i32_1 = arith.constant 0 : i32
    return %c0_i32, %c0_i32_0 : i32, i32
  }
  func.func @transform_4(%arg0: i32) -> i32 {
    %c0_i32 = arith.constant 0 : i32
    %c0_i32_0 = arith.constant 0 : i32
    return %c0_i32 : i32
  }
  func.func @transform_5(%arg0: i32) -> (i32, i32, i32) {
    %c0_i32 = arith.constant 0 : i32
    %c0_i32_0 = arith.constant 0 : i32
    %c0_i32_1 = arith.constant 0 : i32
    return %arg0, %c0_i32, %c0_i32_0 : i32, i32, i32
  }
}

</mosaic_0001>

<llo_original>
// kernel: tpu_custom_call.1
$region0: #{tpu_custom_call.1}
  #allocation0 [shape = 'u32[]', space=smem, size = 0x4, offset = 0x4, fixed_abs, tag = 'smem constant byte address 0x4 - core index']
  #allocation1 [shape = 'u32[72,128]{1,0:T(1,128)}', space=vmem, size = 0x9000, scoped, tag = 'internal scratch']
  #allocation2 [shape = 'f32[1]{0:T(128)S(6)}', space=smem, size = 0x200, scoped, tag = 'scoped memory for tpu_custom_call.1']
  %s0 = inlined_call_operand.hbm [shape: f32[2,8,128], index: 0, kind: input, shape index: {}]
  %s1 = inlined_call_operand.hbm [shape: f32[128,128], index: 1, kind: input, shape index: {}]
  %s2 = inlined_call_operand.vmem [shape: f32[1,128], index: 2, kind: input, shape index: {}]
  %s3 = inlined_call_operand.vmem [shape: f32[1,128], index: 3, kind: input, shape index: {}]
  %s4 = inlined_call_operand.<no memory space> [shape: f32[1], index: 4, kind: input, shape index: {}]
  %s5 = inlined_call_operand.hbm [shape: f32[2,1,128], index: 5, kind: output, shape index: {}]
  %s6 = sld [smem:[#allocation0]]
  $region61: #{tpu_custom_call.1} parent=0
    _
  %s8 = ssub.s32 1, %s6
  %s9 = scalar_select 0, %s8, %s6
  %10 = sst [smem:[#allocation2]] %s4
  $region1: #{tpu_custom_call.1} parent=0
    #allocation3 [shape = 'u8[8192]{0}', space=vmem, size = 0x2000, scoped, tag = 'input window, operand 0']
    #allocation4 [shape = 's32[2]{0}', space=sflag, size = 0x8, scoped, tag = 'scoped memory for tpu_custom_call.1']
    #allocation5 [shape = 's32[2]{0}', space=sflag, size = 0x8, scoped, tag = 'scoped memory for tpu_custom_call.1']
    #allocation6 [shape = 'u8[65536]{0}', space=vmem, size = 0x10000, scoped, tag = 'input window, operand 1, single buffered']
    #allocation7 [shape = 's32[1]{0}', space=sflag, size = 0x4, scoped, tag = 'scoped memory for tpu_custom_call.1']
    #allocation8 [shape = 'u8[1024]{0}', space=vmem, size = 0x400, scoped, tag = 'output window, operand 0']
    %11 = vsyncpa [#allocation4], 0
    %s12 = scalar_lea.sflag [#allocation4], 1
    %13 = vsyncpa %s12, 0
    %14 = vsyncpa [#allocation7], 0
    %15 = vsyncpa [#allocation5], 0
    %s16 = scalar_lea.sflag [#allocation5], 1
    %17 = vsyncpa %s16, 0
    loop: start=0, step=1, limit=4
    $region2: #{tpu_custom_call.1} parent=1 // loop_pre_header
      _
    $region3: #{tpu_custom_call.1} parent=1 // loop_header
      %s19 = sphi 0, %s23
      %p20 = scmp.ge.s32.totalorder %s19, 4
      %s29 = sphi 0, %s31
      %s32 = sphi 0, %s29
      %s33 = sphi 0, %s32
      %s49 = sphi 0, %s33
      %s53 = sphi 0, %s53
      %s55 = sphi 0, %s53
      %s56 = sphi 0, %s55
      %s70 = sphi 0, %s56
      %s74 = sphi 0, %s74
      %s76 = sphi 0, %s74
      %s77 = sphi 0, %s76
      %s91 = sphi 0, %s77
      %s95 = sphi 0, %s95
      %s97 = sphi 0, %s95
      %s98 = sphi 0, %s97
      %s112 = sphi 0, %s98
      %s116 = sphi 0, %s116
      %s118 = sphi 0, %s116
      %s119 = sphi 0, %s118
      %s133 = sphi 0, %s119
      %s139 = sphi 0, %s141
      %s142 = sphi 0, %s139
      %s143 = sphi 0, %s142
      %s159 = sphi 0, %s143
    $region4: #{tpu_custom_call.1} parent=1 // loop_header_branch
      %22 = sbr.rel (%p20) target = $region8
    $region5: #{tpu_custom_call.1} parent=1 // loop_body
      %s24 = ssub.s32 %s19, 1
      %s25 = ssub.s32 %s19, 2
      %s26 = sadd.s32 %s19, 1
      %s27 = ssub.s32 %s19, %s26
      %p28 = scmp.eq.s32.totalorder %s27, 0
      %s30 = sadd.s32 %s29, 1
      %s31 = scalar_select %p28, %s29, %s30
      %p34 = pneg %p28
      %p35 = scmp.eq.s32.totalorder %s19, 1
      %p36 = por %p34, %p35
      %p37 = scmp.ne.s32.totalorder %s29, %s32
      %p38 = scmp.eq.s32.totalorder %s19, 0
      %p39 = por %p37, %p38
      %p40 = scmp.ne.s32.totalorder %s29, %s32
      %p41 = scmp.eq.s32.totalorder %s24, 1
      %p42 = por %p40, %p41
      %p43 = scmp.ne.s32.totalorder %s32, %s33
      %p44 = scmp.eq.s32.totalorder %s24, 0
      %p45 = por %p43, %p44
      %p46 = scmp.ne.s32.totalorder %s32, %s33
      %p47 = scmp.eq.s32.totalorder %s25, 1
      %p48 = por %p46, %p47
      %p50 = scmp.ne.s32.totalorder %s33, %s49
      %p51 = scmp.eq.s32.totalorder %s25, 0
      %p52 = por %p50, %p51
      %s54 = sadd.s32 %s53, 1
      %p57 = scmp.eq.s32.totalorder %s19, 1
      %p58 = scmp.ne.s32.totalorder %s53, %s55
      %p59 = scmp.eq.s32.totalorder %s19, 0
      %p60 = por %p58, %p59
      %p61 = scmp.ne.s32.totalorder %s53, %s55
      %p62 = scmp.eq.s32.totalorder %s24, 1
      %p63 = por %p61, %p62
      %p64 = scmp.ne.s32.totalorder %s55, %s56
      %p65 = scmp.eq.s32.totalorder %s24, 0
      %p66 = por %p64, %p65
      %p67 = scmp.ne.s32.totalorder %s55, %s56
      %p68 = scmp.eq.s32.totalorder %s25, 1
      %p69 = por %p67, %p68
      %p71 = scmp.ne.s32.totalorder %s56, %s70
      %p72 = scmp.eq.s32.totalorder %s25, 0
      %p73 = por %p71, %p72
      %s75 = sadd.s32 %s74, 1
      %p78 = scmp.eq.s32.totalorder %s19, 1
      %p79 = scmp.ne.s32.totalorder %s74, %s76
      %p80 = scmp.eq.s32.totalorder %s19, 0
      %p81 = por %p79, %p80
      %p82 = scmp.ne.s32.totalorder %s74, %s76
      %p83 = scmp.eq.s32.totalorder %s24, 1
      %p84 = por %p82, %p83
      %p85 = scmp.ne.s32.totalorder %s76, %s77
      %p86 = scmp.eq.s32.totalorder %s24, 0
      %p87 = por %p85, %p86
      %p88 = scmp.ne.s32.totalorder %s76, %s77
      %p89 = scmp.eq.s32.totalorder %s25, 1
      %p90 = por %p88, %p89
      %p92 = scmp.ne.s32.totalorder %s77, %s91
      %p93 = scmp.eq.s32.totalorder %s25, 0
      %p94 = por %p92, %p93
      %s96 = sadd.s32 %s95, 1
      %p99 = scmp.eq.s32.totalorder %s19, 1
      %p100 = scmp.ne.s32.totalorder %s95, %s97
      %p101 = scmp.eq.s32.totalorder %s19, 0
      %p102 = por %p100, %p101
      %p103 = scmp.ne.s32.totalorder %s95, %s97
      %p104 = scmp.eq.s32.totalorder %s24, 1
      %p105 = por %p103, %p104
      %p106 = scmp.ne.s32.totalorder %s97, %s98
      %p107 = scmp.eq.s32.totalorder %s24, 0
      %p108 = por %p106, %p107
      %p109 = scmp.ne.s32.totalorder %s97, %s98
      %p110 = scmp.eq.s32.totalorder %s25, 1
      %p111 = por %p109, %p110
      %p113 = scmp.ne.s32.totalorder %s98, %s112
      %p114 = scmp.eq.s32.totalorder %s25, 0
      %p115 = por %p113, %p114
      %s117 = sadd.s32 %s116, 1
      %p120 = scmp.eq.s32.totalorder %s19, 1
      %p121 = scmp.ne.s32.totalorder %s116, %s118
      %p122 = scmp.eq.s32.totalorder %s19, 0
      %p123 = por %p121, %p122
      %p124 = scmp.ne.s32.totalorder %s116, %s118
      %p125 = scmp.eq.s32.totalorder %s24, 1
      %p126 = por %p124, %p125
      %p127 = scmp.ne.s32.totalorder %s118, %s119
      %p128 = scmp.eq.s32.totalorder %s24, 0
      %p129 = por %p127, %p128
      %p130 = scmp.ne.s32.totalorder %s118, %s119
      %p131 = scmp.eq.s32.totalorder %s25, 1
      %p132 = por %p130, %p131
      %p134 = scmp.ne.s32.totalorder %s119, %s133
      %p135 = scmp.eq.s32.totalorder %s25, 0
      %p136 = por %p134, %p135
      %s137 = ssub.s32 %s19, %s26
      %p138 = scmp.eq.s32.totalorder %s137, 0
      %s140 = sadd.s32 %s139, 1
      %s141 = scalar_select %p138, %s139, %s140
      %p144 = pneg %p138
      %p145 = scmp.eq.s32.totalorder %s19, 1
      %p146 = por %p144, %p145
      %p147 = scmp.ne.s32.totalorder %s139, %s142
      %p148 = scmp.eq.s32.totalorder %s19, 0
      %p149 = por %p147, %p148
      %p150 = scmp.ne.s32.totalorder %s139, %s142
      %p151 = scmp.eq.s32.totalorder %s24, 1
      %p152 = por %p150, %p151
      %p153 = scmp.ne.s32.totalorder %s142, %s143
      %p154 = scmp.eq.s32.totalorder %s24, 0
      %p155 = por %p153, %p154
      %p156 = scmp.ne.s32.totalorder %s142, %s143
      %p157 = scmp.eq.s32.totalorder %s25, 1
      %p158 = por %p156, %p157
      %p160 = scmp.ne.s32.totalorder %s143, %s159
      %p161 = scmp.eq.s32.totalorder %s25, 0
      %p162 = por %p160, %p161
      %p163 = scmp.le.s32.totalorder 1, %s19
      %p164 = scmp.lt.s32.totalorder %s19, 3
      %p165 = pnand %p163, %p164
      %p166 = pneg %p165
      // Predicated region
      $region9: #{tpu_custom_call.1} parent=5 // pred_check
        _
      $region10: #{tpu_custom_call.1} parent=5 // pred_check_branch
        %168 = sbr.rel (%p165) target = $region12
      $region11: #{tpu_custom_call.1} parent=5 // pred_region
        %s169 = ssub.s32 %s19, 1
        // Predicated region
        $region13: #{tpu_custom_call.1} parent=11 // pred_check
          %p170 = pneg %p66
        $region14: #{tpu_custom_call.1} parent=11 // pred_check_branch
          %172 = sbr.rel (%p170) target = $region16
        $region15: #{tpu_custom_call.1} parent=11 // pred_region
          %174 = vsyncadd [#allocation7], 0
          %s175 = sshll.u32 %s1, 4
          %s176 = int_to_ptr.hbm [resolvable:$true] %s175
          %s177 = sshll.u32 [#allocation6], 4
          %s178 = int_to_ptr.vmem [resolvable:$true] %s177
          %183 = dma.hbm_to_vmem [thread:$0]  %s176, 2048, %s178, [#allocation7], 128, 128, 8
        $region16: #{tpu_custom_call.1} parent=11 // pred_fallthru
          _
        // Predicated region
        $region17: #{tpu_custom_call.1} parent=11 // pred_check
          %p184 = pneg %p87
        $region18: #{tpu_custom_call.1} parent=11 // pred_check_branch
          %186 = sbr.rel (%p184) target = $region20
        $region19: #{tpu_custom_call.1} parent=11 // pred_region
          _
        $region20: #{tpu_custom_call.1} parent=11 // pred_fallthru
          _
        // Predicated region
        $region21: #{tpu_custom_call.1} parent=11 // pred_check
          %p187 = pneg %p108
        $region22: #{tpu_custom_call.1} parent=11 // pred_check_branch
          %189 = sbr.rel (%p187) target = $region24
        $region23: #{tpu_custom_call.1} parent=11 // pred_region
          _
        $region24: #{tpu_custom_call.1} parent=11 // pred_fallthru
          _
        // Predicated region
        $region25: #{tpu_custom_call.1} parent=11 // pred_check
          %p190 = pneg %p129
        $region26: #{tpu_custom_call.1} parent=11 // pred_check_branch
          %192 = sbr.rel (%p190) target = $region28
        $region27: #{tpu_custom_call.1} parent=11 // pred_region
          _
        $region28: #{tpu_custom_call.1} parent=11 // pred_fallthru
          _
      $region12: #{tpu_custom_call.1} parent=5 // pred_fallthru
        _
      %p193 = scmp.lt.s32.totalorder %s19, 2
      // Predicated region
      $region29: #{tpu_custom_call.1} parent=5 // pred_check
        %p194 = pneg %p193
      $region30: #{tpu_custom_call.1} parent=5 // pred_check_branch
        %196 = sbr.rel (%p194) target = $region32
      $region31: #{tpu_custom_call.1} parent=5 // pred_region
        // Predicated region
        $region33: #{tpu_custom_call.1} parent=31 // pred_check
          %p197 = pneg %p39
        $region34: #{tpu_custom_call.1} parent=31 // pred_check_branch
          %199 = sbr.rel (%p197) target = $region36
        $region35: #{tpu_custom_call.1} parent=31 // pred_region
          %s200 = sand.u32 %s29, 1
          %s201 = scalar_lea.sflag [#allocation4], %s200
          %s202 = sand.u32 %s29, 1
          %s203 = smul.addr %s202, 8
          %s204 = scalar_lea.vmem [#allocation3], %s203
          %206 = vsyncadd %s201, 0
          %s207 = smul.addr %s19, 8
          %s208 = scalar_lea.hbm %s0, %s207
          %s210 = sshll.u32 %s208, 4
          %s211 = int_to_ptr.hbm [resolvable:$true] %s210
          %s212 = sshll.u32 %s204, 4
          %s213 = int_to_ptr.vmem [resolvable:$true] %s212
          %215 = dma.hbm_to_vmem [thread:$0]  %s211, 128, %s213, %s201
        $region36: #{tpu_custom_call.1} parent=31 // pred_fallthru
          _
      $region32: #{tpu_custom_call.1} parent=5 // pred_fallthru
        _
      %p216 = scmp.le.s32.totalorder 1, %s19
      %p217 = scmp.lt.s32.totalorder %s19, 3
      %p218 = pnand %p216, %p217
      %p219 = pneg %p218
      // Predicated region
      $region37: #{tpu_custom_call.1} parent=5 // pred_check
        _
      $region38: #{tpu_custom_call.1} parent=5 // pred_check_branch
        %221 = sbr.rel (%p218) target = $region40
      $region39: #{tpu_custom_call.1} parent=5 // pred_region
        %s222 = ssub.s32 %s19, 1
        %s223 = sand.u32 %s32, 1
        %s224 = scalar_lea.sflag [#allocation4], %s223
        %s225 = sand.u32 %s32, 1
        %s226 = smul.addr %s225, 8
        %s227 = scalar_lea.vmem [#allocation3], %s226
        // Predicated region
        $region41: #{tpu_custom_call.1} parent=39 // pred_check
          %p228 = pneg %p45
        $region42: #{tpu_custom_call.1} parent=39 // pred_check_branch
          %230 = sbr.rel (%p228) target = $region44
        $region43: #{tpu_custom_call.1} parent=39 // pred_region
          %232 = dma.done %s224, 128
        $region44: #{tpu_custom_call.1} parent=39 // pred_fallthru
          _
        // Predicated region
        $region45: #{tpu_custom_call.1} parent=39 // pred_check
          %p233 = pneg %p66
        $region46: #{tpu_custom_call.1} parent=39 // pred_check_branch
          %235 = sbr.rel (%p233) target = $region48
        $region47: #{tpu_custom_call.1} parent=39 // pred_region
          %237 = dma.done [#allocation7], 2048
        $region48: #{tpu_custom_call.1} parent=39 // pred_fallthru
          _
        %s238 = sand.u32 %s32, 1
        %s239 = scalar_lea.sflag [#allocation4], %s238
        %s240 = sand.u32 %s32, 1
        %s241 = smul.addr %s240, 8
        %s242 = scalar_lea.vmem [#allocation3], %s241
        %p243 = pneg %p45
        %p244 = pneg %p42
        %p245 = pneg %p66
        %p246 = pneg %p63
        %p247 = pneg %p87
        %p248 = pneg %p84
        %p249 = pneg %p108
        %p250 = pneg %p105
        %p251 = pneg %p129
        %p252 = pneg %p126
        %p253 = pneg %p155
        %p254 = pneg %p152
        %s255 = sand.u32 %s142, 1
        %s256 = scalar_lea.sflag [#allocation5], %s255
        %s257 = sand.u32 %s142, 1
        %s258 = scalar_lea.vmem [#allocation8], %s257
        %v259 = vld [vmem:[%s227] sm:$0xff]
        %v260 = vld [vmem:[#allocation6] sm:$0xff]
        %v261 = vld [vmem:[#allocation6 + $0x8] sm:$0xff]
        %v262 = vld [vmem:[#allocation6 + $0x10] sm:$0xff]
        %v263 = vld [vmem:[#allocation6 + $0x18] sm:$0xff]
        %v264 = vld [vmem:[#allocation6 + $0x20] sm:$0xff]
        %v265 = vld [vmem:[#allocation6 + $0x28] sm:$0xff]
        %v266 = vld [vmem:[#allocation6 + $0x30] sm:$0xff]
        %v267 = vld [vmem:[#allocation6 + $0x38] sm:$0xff]
        %v268 = vld [vmem:[#allocation6 + $0x40] sm:$0xff]
        %v269 = vld [vmem:[#allocation6 + $0x48] sm:$0xff]
        %v270 = vld [vmem:[#allocation6 + $0x50] sm:$0xff]
        %v271 = vld [vmem:[#allocation6 + $0x58] sm:$0xff]
        %v272 = vld [vmem:[#allocation6 + $0x60] sm:$0xff]
        %v273 = vld [vmem:[#allocation6 + $0x68] sm:$0xff]
        %v274 = vld [vmem:[#allocation6 + $0x70] sm:$0xff]
        %v275 = vld [vmem:[#allocation6 + $0x78] sm:$0xff]
        %v276 = vld [vmem:[%s2] sm:$0x1]
        %v278 = vperm.slane %v276, 0
        %280 = vmatpush.msra.mxu0 %v275
        %281 = vmatpush.msra.mxu0 %v274
        %282 = vmatpush.msra.mxu0 %v273
        %283 = vmatpush.msra.mxu0 %v272
        %284 = vmatpush.msra.mxu0 %v271
        %285 = vmatpush.msra.mxu0 %v270
        %286 = vmatpush.msra.mxu0 %v269
        %287 = vmatpush.msra.mxu0 %v268
        %288 = vmatpush.msra.mxu0 %v267
        %289 = vmatpush.msra.mxu0 %v266
        %290 = vmatpush.msra.mxu0 %v265
        %291 = vmatpush.msra.mxu0 %v264
        %292 = vmatpush.msra.mxu0 %v263
        %293 = vmatpush.msra.mxu0 %v262
        %294 = vmatpush.msra.mxu0 %v261
        %295 = vmatpush.msra.mxu0 %v260
        %296 = vmatmul.f32.gmra.mxu0 %v259
        %v297 = vpop.f32.mrf.mxu0
        %v298 = vadd.f32 %v278, %v297
        %299 = vdwg.mxu0
        %v300 = vmax.f32 %v298, 0.0
        %v301 = vrot.slane %v300, 4
        %v302 = vadd.f32 %v300, %v301
        %v303 = vrot.slane %v302, 2
        %v304 = vadd.f32 %v302, %v303
        %v305 = vrot.slane %v304, 1
        %v306 = vadd.f32 %v304, %v305
        %v307 = vld [vmem:[%s3] sm:$0x1]
        %v308 = vmul.f32 %v306, %v307
        %vm309 = vcmask 1040384
        %v310 = vsel %vm309, %v308, 0.0
        %311 = vadd.xlane.f32.xlu0 %v310
        %v312 = vpop.xlane.xlu0 %311
        %s313 = sld [smem:[#allocation2]]
        %v314 = vstv %s313
        %v315 = vadd.f32 %v312, %v314
        %316 = vst [vmem:[%s258] sm:$0x1] %v315
        %s317 = sand.u32 %s142, 1
        %s318 = scalar_lea.sflag [#allocation5], %s317
        %s319 = sand.u32 %s142, 1
        %s320 = scalar_lea.vmem [#allocation8], %s319
        // Predicated region
        $region49: #{tpu_custom_call.1} parent=39 // pred_check
          %p321 = pneg %p152
        $region50: #{tpu_custom_call.1} parent=39 // pred_check_branch
          %323 = sbr.rel (%p321) target = $region52
        $region51: #{tpu_custom_call.1} parent=39 // pred_region
          %325 = vsyncadd %s318, 0
          %s326 = scalar_lea.hbm %s5, %s24
          %s328 = sshll.u32 %s320, 4
          %s329 = int_to_ptr.vmem [resolvable:$true] %s328
          %s330 = sshll.u32 %s326, 4
          %s331 = int_to_ptr.hbm [resolvable:$true] %s330
          %333 = dma.vmem_to_hbm [thread:$0]  %s329, 16, %s331, %s318
        $region52: #{tpu_custom_call.1} parent=39 // pred_fallthru
          _
      $region40: #{tpu_custom_call.1} parent=5 // pred_fallthru
        _
      %p334 = scmp.le.s32.totalorder 2, %s19
      // Predicated region
      $region53: #{tpu_custom_call.1} parent=5 // pred_check
        %p335 = pneg %p334
      $region54: #{tpu_custom_call.1} parent=5 // pred_check_branch
        %337 = sbr.rel (%p335) target = $region56
      $region55: #{tpu_custom_call.1} parent=5 // pred_region
        %s338 = ssub.s32 %s19, 2
        // Predicated region
        $region57: #{tpu_custom_call.1} parent=55 // pred_check
          %p339 = pneg %p158
        $region58: #{tpu_custom_call.1} parent=55 // pred_check_branch
          %341 = sbr.rel (%p339) target = $region60
        $region59: #{tpu_custom_call.1} parent=55 // pred_region
          %s342 = sand.u32 %s143, 1
          %s343 = scalar_lea.sflag [#allocation5], %s342
          %s344 = sand.u32 %s143, 1
          %s345 = scalar_lea.vmem [#allocation8], %s344
          %347 = dma.done %s343, 16
        $region60: #{tpu_custom_call.1} parent=55 // pred_fallthru
          _
      $region56: #{tpu_custom_call.1} parent=5 // pred_fallthru
        _
    $region6: #{tpu_custom_call.1} parent=1 // loop_footer
      %s23 = sadd.s32 1, %s19
    $region7: #{tpu_custom_call.1} parent=1 // loop_footer_branch
      %18 = sbr.rel target = $region3
    $region8: #{tpu_custom_call.1} parent=1 // loop_exit
      _
    %348 = vsyncpa [#allocation4], 1
    %s349 = scalar_lea.sflag [#allocation4], 1
    %350 = vsyncpa %s349, 1
    %351 = vsyncpa [#allocation7], 1
    %352 = vsyncpa [#allocation5], 1
    %s353 = scalar_lea.sflag [#allocation5], 1
    %354 = vsyncpa %s353, 1

</llo_original>
